<compile_context>
chip_gen: v7x
topology: tpu7x:2x2x1
jax: 0.10.0
libtpu: 0.0.40
codegen_flags: <defaults>
</compile_context>

<pallas_src>
import jax
import jax.numpy as jnp
from jax.experimental import pallas as pl
from jax.experimental.pallas import tpu as pltpu


_LANE = 128


# ----------------------------------------------------------------------------
# Pallas kernel: elementwise copy of one (TM, COLS) VMEM tile.
# ----------------------------------------------------------------------------
def _copy_kernel(x_ref, o_ref):
    o_ref[...] = x_ref[...]


def _sublane_mult(dtype) -> int:
    """Packed-sublane multiple: 8 for 32-bit, 16 for 16-bit, 32 for 8-bit."""
    return {1: 32, 2: 16, 4: 8}.get(jnp.dtype(dtype).itemsize, 8)


def _vmem_budget():
    """(per-buffer tile bytes, vmem_limit_bytes or None), generation-aware.

    2 MiB/buffer (2 specs x 2 double-buffers = 8 MiB total) fits every chip's
    *default* scoped VMEM (v5e 16 MiB, v6e/v7x 32 MiB) at ~85% of the copy
    roofline.  v6e alone (128 MiB physical VMEM) gets a 4 MiB bump paired with
    an explicit scoped-VMEM limit.
    """
    try:
        kind = jax.devices()[0].device_kind.lower()
    except Exception:  # pragma: no cover - defensive only
        kind = ""
    if "v6" in kind:
        return 4 << 20, 64 << 20
    return 2 << 20, None


def _pick_layout(total_p, sublane, itemsize, tile_bytes):
    """Pick (rows, cols): cols a multiple of 128 dividing total_p, rows a
    multiple of `sublane`, minimum tile (sublane x cols) within the budget."""
    max_cols = min(total_p // sublane, tile_bytes // (sublane * itemsize))
    cols = _LANE  # guaranteed legal: total_p is a multiple of sublane*128
    k = max_cols // _LANE
    while k >= 1:
        c = k * _LANE
        if total_p % c == 0 and (total_p // c) % sublane == 0:
            cols = c
            break
        k -= 1
    return total_p // cols, cols


def _pick_tm(rows, cols, sublane, itemsize, tile_bytes):
    """Rows per tile: fill the budget, sublane-rounded, exact divisor of rows,
    and split into >=2 grid steps when possible (v7x megacore)."""
    tm = (tile_bytes // (cols * itemsize)) // sublane * sublane
    tm = max(sublane, min(tm, rows))
    while rows % tm != 0:          # rows % sublane == 0, so this terminates
        tm -= sublane
    if tm == rows and rows >= 2 * sublane:
        tm = max(sublane, (rows // 2) // sublane * sublane)
        while rows % tm != 0:
            tm -= sublane
    return tm


def _identity_via_pallas(x):
    shape, dtype = x.shape, x.dtype
    total = 1
    for d in shape:
        total *= d
    itemsize = jnp.dtype(dtype).itemsize
    sublane = _sublane_mult(dtype)
    chunk = sublane * _LANE
    tile_bytes, vmem_limit = _vmem_budget()

    flat = x.reshape(total)
    total_p = ((total + chunk - 1) // chunk) * chunk
    if total_p != total:
        # Pad to a full (sublane x 128) multiple: keeps every DMA / store
        # full-width (no vst.msk) and bounds the tile size on odd shapes.
        flat = jnp.pad(flat, (0, total_p - total))

    rows, cols = _pick_layout(total_p, sublane, itemsize, tile_bytes)
    tm = _pick_tm(rows, cols, sublane, itemsize, tile_bytes)
    grid_rows = rows // tm

    x2d = flat.reshape(rows, cols)
    out2d = pl.pallas_call(
        _copy_kernel,
        out_shape=jax.ShapeDtypeStruct((rows, cols), dtype),
        grid=(grid_rows,),
        in_specs=[pl.BlockSpec((tm, cols), lambda i: (i, 0))],
        out_specs=pl.BlockSpec((tm, cols), lambda i: (i, 0)),
        # Pure copy, each tile writes exactly where it read: alias in->out so
        # no separate HBM output allocation is needed (alias realized when the
        # operand is a free intermediate, e.g. the padded flat array).
        input_output_aliases={0: 0},
        compiler_params=pltpu.CompilerParams(
            # "parallel" lets v7x shard grid steps across its 2 TensorCores.
            dimension_semantics=("parallel",),
            vmem_limit_bytes=vmem_limit,
        ),
        cost_estimate=pl.CostEstimate(
            flops=0, transcendentals=0, bytes_accessed=2 * total_p * itemsize
        ),
    )(x2d)

    out_flat = out2d.reshape(total_p)
    if total_p != total:
        out_flat = out_flat[:total]
    return out_flat.reshape(shape)


_identity_via_pallas_jit = jax.jit(_identity_via_pallas)


def base_net_forward(x_nchw: jax.Array, *, run_kernel: bool = False) -> jax.Array:
    """Identity forward of the parameter-free BaseNet.

    Default (run_kernel=False) is the production-optimal path: return the input
    unchanged — zero FLOPs, zero HBM traffic, no output allocation.  Pass
    run_kernel=True to run the tiled, pipelined, lane-dense Pallas copy kept as
    scaffolding that a concrete subclass would extend with real compute.
    """
    if not run_kernel:
        return x_nchw
    if x_nchw.size == 0:
        return x_nchw
    return _identity_via_pallas_jit(x_nchw)


# ----------------------------------------------------------------------------
# JAX-side mirror of BaseNet's non-forward surface (it holds no parameters).
# ----------------------------------------------------------------------------
class BaseNetJAX:
    def __init__(self, opt=None, device="tpu"):
        self.opt = opt
        self.device = device
        self.prime = device in ("cuda:0", "cpu")
        self._num_params = 0
        self._trainable_params = 0
        self.params = {}  # BaseNet.__init__ registers no parameters.

    def get_name(self) -> str:
        return self.__class__.__name__

    def count_params(self):
        sizes = [p.size for p in jax.tree_util.tree_leaves(self.params)]
        self._num_params = int(sum(sizes))
        self._trainable_params = int(sum(sizes))

    def get_params(self):
        return self._num_params

    def get_tparams(self):
        return self._trainable_params

    def empty_tensor(self):
        # torch.tensor([]) -> float32 empty tensor
        return jnp.zeros((0,), dtype=jnp.float32)

    def forward(self, x, run_kernel: bool = False):
        # Runnable stand-in for the abstract forward: identity.  Default is the
        # zero-cost no-kernel path; run_kernel=True exercises the Pallas copy.
        return base_net_forward(x, run_kernel=run_kernel)


if __name__ == "__main__":
    # Deterministic small NCHW input consistent with a conv-style network.
    key = jax.random.PRNGKey(0)
    x = jax.random.normal(key, (2, 4, 16, 16), dtype=jnp.float32)

    net = BaseNetJAX(opt=None, device="tpu")
    net.count_params()
    assert net.get_params() == 0 and net.get_tparams() == 0
    assert net.empty_tensor().shape == (0,)

    # Production-default path: zero-cost identity (no kernel, no HBM traffic).
    y_fast = net.forward(x)
    assert y_fast is x

    # Kernel scaffolding path: tiled, pipelined, lane-dense Pallas copy.
    y = base_net_forward(x, run_kernel=True)
    y = jax.block_until_ready(y)
    assert y.shape == x.shape and y.dtype == x.dtype
    assert bool(jnp.all(y == x))

    # Shape whose element count is NOT a multiple of 1024: exercises the
    # pad-to-lane-dense path (bounded tiles, unmasked full-width stores).
    x_odd = jax.random.normal(jax.random.PRNGKey(1), (2, 3, 15, 15), dtype=jnp.float32)
    y_odd = jax.block_until_ready(base_net_forward(x_odd, run_kernel=True))
    assert y_odd.shape == x_odd.shape and y_odd.dtype == x_odd.dtype
    assert bool(jnp.all(y_odd == x_odd))

    print("KERNEL_OK")
</pallas_src>

<mosaic_0001>
module attributes {stable_mosaic.version = 11 : i64} {
  func.func @_copy_kernel(%arg0: i32, %arg1: memref<8x256xf32, #tpu.memory_space<vmem>>, %arg2: memref<8x256xf32, #tpu.memory_space<vmem>>) attributes {dimension_semantics = [#tpu.dimension_semantics<parallel>], iteration_bounds = array<i64: 1>, scalar_prefetch = 0 : i64, scratch_operands = 0 : i64, tpu.core_type = #tpu.core_type<tc>, window_params = [{transform_indices = @transform_0, window_bounds = array<i64: 8, 256>}, {transform_indices = @transform_1, window_bounds = array<i64: 8, 256>}]} {
    %c0 = arith.constant 0 : index
    %c0_0 = arith.constant 0 : index
    %0 = vector.load %arg1[%c0, %c0_0] : memref<8x256xf32, #tpu.memory_space<vmem>>, vector<8x256xf32>
    %c0_1 = arith.constant 0 : index
    %c0_2 = arith.constant 0 : index
    %1 = vector.load %arg2[%c0_1, %c0_2] : memref<8x256xf32, #tpu.memory_space<vmem>>, vector<8x256xf32>
    tpu.vector_store %arg2[%c0_1, %c0_2], %0 {strides = array<i32>} : memref<8x256xf32, #tpu.memory_space<vmem>>, vector<8x256xf32>,
    return
  }
  func.func @transform_0(%arg0: i32) -> (i32, i32) {
    %c0_i32 = arith.constant 0 : i32
    %c0_i32_0 = arith.constant 0 : i32
    return %arg0, %c0_i32 : i32, i32
  }
  func.func @transform_1(%arg0: i32) -> (i32, i32) {
    %c0_i32 = arith.constant 0 : i32
    %c0_i32_0 = arith.constant 0 : i32
    return %arg0, %c0_i32 : i32, i32
  }
}

</mosaic_0001>

<llo_original>
// kernel: _identity_via_pallas.1
$region0: #{_identity_via_pallas.1}
  #allocation0 [shape = 'u32[]', space=smem, size = 0x4, offset = 0x4, fixed_abs, tag = 'smem constant byte address 0x4 - core index']
  #allocation1 [shape = 'u32[144,128]{1,0:T(1,128)}', space=vmem, size = 0x12000, scoped, tag = 'internal scratch']
  %s0 = inlined_call_operand.vmem [shape: f32[8,256], index: 0, kind: input, shape index: {}, may-alias: {0,1}]
  %s1 = inlined_call_operand.vmem [shape: f32[8,256], index: 1, kind: output, shape index: {}, may-alias: {0,1}]
  %s2 = sld [smem:[#allocation0]]
  $region14: #{_identity_via_pallas.1} parent=0
    _
  %s4 = ssub.s32 1, %s2
  %s5 = scalar_select 0, %s4, %s2
  // Predicated region
  $region2: #{_identity_via_pallas.1} parent=0 // pred_check
    _
  $region3: #{_identity_via_pallas.1} parent=0 // pred_check_branch
    %7 = sbr.rel (0) target = $region5
  $region4: #{_identity_via_pallas.1} parent=0 // pred_region
    _
  $region5: #{_identity_via_pallas.1} parent=0 // pred_fallthru
    _
  %v8 = vld [vmem:[%s0] sm:$0xff]
  %v9 = vld [vmem:[%s0 + $0x8] sm:$0xff]
  %10 = vst [vmem:[%s1] sm:$0xff] %v8
  %11 = vst [vmem:[%s1 + $0x8] sm:$0xff] %v9
  // Predicated region
  $region6: #{_identity_via_pallas.1} parent=0 // pred_check
    _
  $region7: #{_identity_via_pallas.1} parent=0 // pred_check_branch
    %13 = sbr.rel (0) target = $region9
  $region8: #{_identity_via_pallas.1} parent=0 // pred_region
    _
  $region9: #{_identity_via_pallas.1} parent=0 // pred_fallthru
    _
  // Predicated region
  $region10: #{_identity_via_pallas.1} parent=0 // pred_check
    _
  $region11: #{_identity_via_pallas.1} parent=0 // pred_check_branch
    %15 = sbr.rel (0) target = $region13
  $region12: #{_identity_via_pallas.1} parent=0 // pred_region
    _
  $region13: #{_identity_via_pallas.1} parent=0 // pred_fallthru
    _

</llo_original>
